<compile_context>
chip_gen: v6e
topology: v6e:2x2x1
jax: 0.10.0
libtpu: 0.0.40
codegen_flags: <defaults>
</compile_context>

<pallas_src>
import functools

import jax
import jax.numpy as jnp
from jax.experimental import pallas as pl
from jax.experimental.pallas import tpu as pltpu


def _round_up(x, m):
    return ((x + m - 1) // m) * m


def _sublane_multiple(dtype):
    # Sublane packing: 8 rows/vreg for 4-byte, 16 for 2-byte, 32 for 1-byte dtypes.
    return {4: 8, 2: 16, 1: 32}[jnp.dtype(dtype).itemsize]


def _level_attention_kernel(n_valid, tn, has_tail,
                            x_ref, wt_ref, b_ref, v_ref, o_ref,
                            m_sc, l_sc, acc_sc):
    # x: (tn, E)   wt: (E, D) bf16   b: (1, D) f32   v: (1, D) f32   o: (1, E)
    # scratch: m (1,1) f32, l (1,1) f32, acc (1, E) f32
    i = pl.program_id(0)
    nprog = pl.num_programs(0)

    @pl.when(i == 0)
    def _init():
        m_sc[...] = jnp.full_like(m_sc, -1e30)
        l_sc[...] = jnp.zeros_like(l_sc)
        acc_sc[...] = jnp.zeros_like(acc_sc)

    def step(mask_rows):
        x = x_ref[...]

        if mask_rows:
            # Rows beyond the true sequence length hold undefined bits (the last
            # block of a cdiv grid reads past the array end).  Zero them in x so
            # no NaN/Inf can reach the matmul or the weighted-sum accumulator.
            row = i * tn + jax.lax.broadcasted_iota(jnp.int32, (tn, 1), 0)
            valid = row < n_valid                                  # (tn, 1) bool
            x = jnp.where(valid, x, jnp.zeros_like(x))

        # u = tanh(x @ W^T + b) -- the only real matmul, bf16 operands, f32 acc.
        u = jnp.tanh(
            jnp.dot(x.astype(jnp.bfloat16), wt_ref[...],
                    preferred_element_type=jnp.float32)
            + b_ref[...])                                          # (tn, D) f32

        # scores = u @ v as broadcast-multiply + lane reduce (VPU + XLU, MXU free).
        # v_W bias intentionally omitted: it cancels in the softmax.
        scores = jnp.sum(u * v_ref[...], axis=-1, keepdims=True)   # (tn, 1) f32
        if mask_rows:
            scores = jnp.where(valid, scores, -1e30)

        # Online softmax over the sequence axis, fused with the weighted sum.
        m_old = m_sc[...]                                          # (1, 1)
        m_new = jnp.maximum(m_old, jnp.max(scores, axis=0, keepdims=True))
        alpha = jnp.exp(m_old - m_new)                             # (1, 1)
        p = jnp.exp(scores - m_new)                                # (tn, 1)

        l_sc[...] = alpha * l_sc[...] + jnp.sum(p, axis=0, keepdims=True)
        acc_sc[...] = alpha * acc_sc[...] + jnp.sum(
            p * x.astype(jnp.float32), axis=0, keepdims=True)      # (1, E)
        m_sc[...] = m_new

    if has_tail:
        # Only the last tile can contain padded rows; skip masking everywhere else.
        @pl.when(i != nprog - 1)
        def _full_tile():
            step(False)

        @pl.when(i == nprog - 1)
        def _tail_tile():
            step(True)
    else:
        step(False)

    @pl.when(i == nprog - 1)
    def _finalize():
        inv_l = pl.reciprocal(l_sc[...], approx=True)              # EUP slot, ~free
        o_ref[...] = (acc_sc[...] * inv_l).astype(o_ref.dtype)


def level_attention(x, W_W_weight, W_W_bias, v_W_weight, v_W_bias, *,
                    block_n=None, target_tile_bytes=2 << 20):
    """x: (N, E); W_W_weight: (D, E); W_W_bias: (D,); v_W_weight: (1, D); v_W_bias: (1,).

    Returns the (E,) attention-weighted sum, matching the PyTorch module's .squeeze().
    v_W_bias is accepted for API parity but unused (it cancels inside the softmax).
    """
    N, E = x.shape
    D = W_W_weight.shape[0]

    sub = _sublane_multiple(x.dtype)
    itemsize = jnp.dtype(x.dtype).itemsize

    # Auto-scale the sequence tile to ~target_tile_bytes (~2 MiB) so each grid step
    # amortizes the per-step pipeline overhead; double-buffered that is ~4 MiB of
    # VMEM for x plus ~2x the resident W^T, comfortably inside every generation's
    # default scoped-VMEM limit (16/32/32 MiB on v5e/v6e/v7x).
    if block_n is None:
        tn = max(sub, target_tile_bytes // max(1, E * itemsize))
    else:
        tn = max(sub, block_n)
    tn = _round_up(tn, sub)
    tn = min(tn, _round_up(N, sub))        # never bigger than the (rounded) sequence

    num_tiles = pl.cdiv(N, tn)
    has_tail = (N % tn) != 0               # static: masking is only emitted if needed

    wt = W_W_weight.T.astype(jnp.bfloat16)            # (E, D) bf16 MXU operand
    b = W_W_bias.reshape(1, D).astype(jnp.float32)    # (1, D)
    v = v_W_weight.reshape(1, D).astype(jnp.float32)  # (1, D) lane-dense row

    kernel = functools.partial(_level_attention_kernel, N, tn, has_tail)

    out = pl.pallas_call(
        kernel,
        out_shape=jax.ShapeDtypeStruct((1, E), x.dtype),
        grid_spec=pltpu.PrefetchScalarGridSpec(
            num_scalar_prefetch=0,
            grid=(num_tiles,),
            in_specs=[
                pl.BlockSpec((tn, E), lambda i: (i, 0)),   # x streams (double-buffered)
                pl.BlockSpec((E, D), lambda i: (0, 0)),    # W^T resident across the grid
                pl.BlockSpec((1, D), lambda i: (0, 0)),    # bias resident
                pl.BlockSpec((1, D), lambda i: (0, 0)),    # v row resident
            ],
            out_specs=pl.BlockSpec((1, E), lambda i: (0, 0)),
            scratch_shapes=[
                pltpu.VMEM((1, 1), jnp.float32),   # running max m
                pltpu.VMEM((1, 1), jnp.float32),   # running denom l
                pltpu.VMEM((1, E), jnp.float32),   # running weighted-sum acc
            ],
        ),
        compiler_params=pltpu.CompilerParams(
            dimension_semantics=("arbitrary",),    # sequence axis is a reduction
        ),
    )(x, wt, b, v)
    return out[0]                                   # (E,)


def level_attention_ref(x, W_W_weight, W_W_bias, v_W_weight, v_W_bias):
    hp = jax.lax.Precision.HIGHEST
    u = jnp.tanh(jnp.dot(x, W_W_weight.T, precision=hp) + W_W_bias)
    s = jnp.dot(u, v_W_weight.T, precision=hp) + v_W_bias          # (N, 1)
    a = jax.nn.softmax(s, axis=0)
    return jnp.dot(a.T, x, precision=hp)[0]


if __name__ == "__main__":
    # Small shapes consistent with the module: word_embedding_size=128, d_weight=128.
    E, D = 128, 128

    key = jax.random.PRNGKey(0)
    kx, kw, kb, kv, kc, kx2 = jax.random.split(key, 6)

    W_W_weight = jax.random.normal(kw, (D, E), dtype=jnp.float32) * (1.0 / E ** 0.5)
    W_W_bias = jax.random.normal(kb, (D,), dtype=jnp.float32) * 0.02
    v_W_weight = jax.random.normal(kv, (1, D), dtype=jnp.float32) * (1.0 / D ** 0.5)
    v_W_bias = jax.random.normal(kc, (1,), dtype=jnp.float32) * 0.02

    # Note: the kernel feeds bf16 operands to the MXU (f32 accumulate), so comparisons
    # against an f32 HIGHEST-precision reference carry ~1e-2-level error.
    TOL = dict(atol=2e-2, rtol=2e-2)

    # Case 1: tiny sequence (single full tile, no tail masking emitted).
    x = jax.random.normal(kx, (8, E), dtype=jnp.float32)
    out = jax.block_until_ready(
        level_attention(x, W_W_weight, W_W_bias, v_W_weight, v_W_bias))
    ref = level_attention_ref(x, W_W_weight, W_W_bias, v_W_weight, v_W_bias)
    assert out.shape == (E,)
    assert jnp.allclose(out, ref, **TOL), "mismatch vs reference (N=8)"

    # Case 2: multi-tile grid with a ragged tail (exercises online softmax + tail mask).
    x2 = jax.random.normal(kx2, (300, E), dtype=jnp.float32)
    out2 = jax.block_until_ready(
        level_attention(x2, W_W_weight, W_W_bias, v_W_weight, v_W_bias, block_n=128))
    ref2 = level_attention_ref(x2, W_W_weight, W_W_bias, v_W_weight, v_W_bias)
    assert out2.shape == (E,)
    assert jnp.allclose(out2, ref2, **TOL), "mismatch vs reference (N=300, tn=128)"

    # Case 3: auto-sized tile (single partial block, no wrapper pad).
    out3 = jax.block_until_ready(
        level_attention(x2, W_W_weight, W_W_bias, v_W_weight, v_W_bias))
    assert out3.shape == (E,)
    assert jnp.allclose(out3, ref2, **TOL), "mismatch vs reference (N=300, auto tile)"

    print("KERNEL_OK")
</pallas_src>

<mosaic_0001>
module attributes {stable_mosaic.version = 11 : i64} {
  func.func @_level_attention_kernel(%arg0: i32, %arg1: memref<8x128xf32, #tpu.memory_space<vmem>>, %arg2: memref<128x128xbf16, #tpu.memory_space<vmem>>, %arg3: memref<1x128xf32, #tpu.memory_space<vmem>>, %arg4: memref<1x128xf32, #tpu.memory_space<vmem>>, %arg5: memref<1x128xf32, #tpu.memory_space<vmem>>, %arg6: memref<1x1xf32, #tpu.memory_space<vmem>>, %arg7: memref<1x1xf32, #tpu.memory_space<vmem>>, %arg8: memref<1x128xf32, #tpu.memory_space<vmem>>) attributes {dimension_semantics = [#tpu.dimension_semantics<arbitrary>], iteration_bounds = array<i64: 1>, scalar_prefetch = 0 : i64, scratch_operands = 3 : i64, tpu.core_type = #tpu.core_type<tc>, window_params = [{transform_indices = @transform_0, window_bounds = array<i64: 8, 128>}, {pipeline_mode = #tpu.pipeline_mode<synchronous>, transform_indices = @transform_1, window_bounds = array<i64: 128, 128>}, {pipeline_mode = #tpu.pipeline_mode<synchronous>, transform_indices = @transform_2, window_bounds = array<i64: 1, 128>}, {pipeline_mode = #tpu.pipeline_mode<synchronous>, transform_indices = @transform_3, window_bounds = array<i64: 1, 128>}, {pipeline_mode = #tpu.pipeline_mode<synchronous>, transform_indices = @transform_4, window_bounds = array<i64: 1, 128>}]} {
    %c0_i32 = arith.constant 0 : i32
    %0 = arith.cmpi eq, %arg0, %c0_i32 : i32
    %1 = arith.extui %0 : i1 to i32
    %c0_i32_0 = arith.constant 0 : i32
    %2 = arith.cmpi ne, %1, %c0_i32_0 : i32
    scf.if %2 {
      %cst_26 = arith.constant -1.000000e+30 : f32
      %44 = vector.broadcast %cst_26 : f32 to vector<1x1xf32>
      %c0_27 = arith.constant 0 : index
      %c0_28 = arith.constant 0 : index
      %45 = vector.load %arg6[%c0_27, %c0_28] : memref<1x1xf32, #tpu.memory_space<vmem>>, vector<1x1xf32>
      tpu.vector_store %arg6[%c0_27, %c0_28], %44 {strides = array<i32>} : memref<1x1xf32, #tpu.memory_space<vmem>>, vector<1x1xf32>,
      %cst_29 = arith.constant 0.000000e+00 : f32
      %46 = vector.broadcast %cst_29 : f32 to vector<1x1xf32>
      %c0_30 = arith.constant 0 : index
      %c0_31 = arith.constant 0 : index
      %47 = vector.load %arg7[%c0_30, %c0_31] : memref<1x1xf32, #tpu.memory_space<vmem>>, vector<1x1xf32>
      tpu.vector_store %arg7[%c0_30, %c0_31], %46 {strides = array<i32>} : memref<1x1xf32, #tpu.memory_space<vmem>>, vector<1x1xf32>,
      %cst_32 = arith.constant 0.000000e+00 : f32
      %48 = vector.broadcast %cst_32 : f32 to vector<1x128xf32>
      %c0_33 = arith.constant 0 : index
      %c0_34 = arith.constant 0 : index
      %49 = vector.load %arg8[%c0_33, %c0_34] : memref<1x128xf32, #tpu.memory_space<vmem>>, vector<1x128xf32>
      tpu.vector_store %arg8[%c0_33, %c0_34], %48 {strides = array<i32>} : memref<1x128xf32, #tpu.memory_space<vmem>>, vector<1x128xf32>,
    } else {
    }
    %c0 = arith.constant 0 : index
    %c0_1 = arith.constant 0 : index
    %3 = vector.load %arg1[%c0, %c0_1] : memref<8x128xf32, #tpu.memory_space<vmem>>, vector<8x128xf32>
    %4 = arith.truncf %3 : vector<8x128xf32> to vector<8x128xbf16>
    %c0_2 = arith.constant 0 : index
    %c0_3 = arith.constant 0 : index
    %5 = vector.load %arg2[%c0_2, %c0_3] : memref<128x128xbf16, #tpu.memory_space<vmem>>, vector<128x128xbf16>
    %cst = arith.constant dense<0.000000e+00> : vector<8x128xf32>
    %6 = tpu.matmul %4, %5, %cst {dimension_numbers = #tpu.dot_dimension_numbers<[1], [0], [0], [1], [0, 0, 1, 1], [], []>} : vector<8x128xbf16>, vector<128x128xbf16>, vector<8x128xf32> -> vector<8x128xf32>
    %c0_4 = arith.constant 0 : index
    %c0_5 = arith.constant 0 : index
    %7 = vector.load %arg3[%c0_4, %c0_5] : memref<1x128xf32, #tpu.memory_space<vmem>>, vector<1x128xf32>
    %8 = vector.broadcast %7 : vector<1x128xf32> to vector<8x128xf32>
    %9 = arith.addf %6, %8 : vector<8x128xf32>
    %10 = math.tanh %9 : vector<8x128xf32>
    %c0_6 = arith.constant 0 : index
    %c0_7 = arith.constant 0 : index
    %11 = vector.load %arg4[%c0_6, %c0_7] : memref<1x128xf32, #tpu.memory_space<vmem>>, vector<1x128xf32>
    %12 = vector.broadcast %11 : vector<1x128xf32> to vector<8x128xf32>
    %13 = arith.mulf %10, %12 : vector<8x128xf32>
    %cst_8 = arith.constant dense<0.000000e+00> : vector<8xf32>
    %14 = vector.multi_reduction <add>, %13, %cst_8 [1] : vector<8x128xf32> to vector<8xf32>
    %15 = vector.shape_cast %14 : vector<8xf32> to vector<8x1xf32>
    %c0_9 = arith.constant 0 : index
    %c0_10 = arith.constant 0 : index
    %16 = vector.load %arg6[%c0_9, %c0_10] : memref<1x1xf32, #tpu.memory_space<vmem>>, vector<1x1xf32>
    %cst_11 = arith.constant dense<0xFF800000> : vector<1xf32>
    %17 = vector.multi_reduction <maximumf>, %15, %cst_11 [0] : vector<8x1xf32> to vector<1xf32>
    %18 = vector.shape_cast %17 : vector<1xf32> to vector<1x1xf32>
    %19 = arith.maximumf %16, %18 : vector<1x1xf32>
    %20 = arith.subf %16, %19 : vector<1x1xf32>
    %21 = math.exp %20 : vector<1x1xf32>
    %22 = vector.broadcast %19 : vector<1x1xf32> to vector<8x1xf32>
    %23 = arith.subf %15, %22 : vector<8x1xf32>
    %24 = math.exp %23 : vector<8x1xf32>
    %c0_12 = arith.constant 0 : index
    %c0_13 = arith.constant 0 : index
    %25 = vector.load %arg7[%c0_12, %c0_13] : memref<1x1xf32, #tpu.memory_space<vmem>>, vector<1x1xf32>
    %26 = arith.mulf %21, %25 : vector<1x1xf32>
    %cst_14 = arith.constant dense<0.000000e+00> : vector<1xf32>
    %27 = vector.multi_reduction <add>, %24, %cst_14 [0] : vector<8x1xf32> to vector<1xf32>
    %28 = vector.shape_cast %27 : vector<1xf32> to vector<1x1xf32>
    %29 = arith.addf %26, %28 : vector<1x1xf32>
    %c0_15 = arith.constant 0 : index
    %c0_16 = arith.constant 0 : index
    %30 = vector.load %arg7[%c0_15, %c0_16] : memref<1x1xf32, #tpu.memory_space<vmem>>, vector<1x1xf32>
    tpu.vector_store %arg7[%c0_15, %c0_16], %29 {strides = array<i32>} : memref<1x1xf32, #tpu.memory_space<vmem>>, vector<1x1xf32>,
    %c0_17 = arith.constant 0 : index
    %c0_18 = arith.constant 0 : index
    %31 = vector.load %arg8[%c0_17, %c0_18] : memref<1x128xf32, #tpu.memory_space<vmem>>, vector<1x128xf32>
    %32 = vector.broadcast %21 : vector<1x1xf32> to vector<1x128xf32>
    %33 = arith.mulf %32, %31 : vector<1x128xf32>
    %34 = vector.broadcast %24 : vector<8x1xf32> to vector<8x128xf32>
    %35 = arith.mulf %34, %3 : vector<8x128xf32>
    %cst_19 = arith.constant dense<0.000000e+00> : vector<128xf32>
    %36 = vector.multi_reduction <add>, %35, %cst_19 [0] : vector<8x128xf32> to vector<128xf32>
    %37 = vector.shape_cast %36 : vector<128xf32> to vector<1x128xf32>
    %38 = arith.addf %33, %37 : vector<1x128xf32>
    %c0_20 = arith.constant 0 : index
    %c0_21 = arith.constant 0 : index
    %39 = vector.load %arg8[%c0_20, %c0_21] : memref<1x128xf32, #tpu.memory_space<vmem>>, vector<1x128xf32>
    tpu.vector_store %arg8[%c0_20, %c0_21], %38 {strides = array<i32>} : memref<1x128xf32, #tpu.memory_space<vmem>>, vector<1x128xf32>,
    %c0_22 = arith.constant 0 : index
    %c0_23 = arith.constant 0 : index
    %40 = vector.load %arg6[%c0_22, %c0_23] : memref<1x1xf32, #tpu.memory_space<vmem>>, vector<1x1xf32>
    tpu.vector_store %arg6[%c0_22, %c0_23], %19 {strides = array<i32>} : memref<1x1xf32, #tpu.memory_space<vmem>>, vector<1x1xf32>,
    %c0_i32_24 = arith.constant 0 : i32
    %41 = arith.cmpi eq, %arg0, %c0_i32_24 : i32
    %42 = arith.extui %41 : i1 to i32
    %c0_i32_25 = arith.constant 0 : i32
    %43 = arith.cmpi ne, %42, %c0_i32_25 : i32
    scf.if %43 {
      %c0_26 = arith.constant 0 : index
      %c0_27 = arith.constant 0 : index
      %44 = vector.load %arg7[%c0_26, %c0_27] : memref<1x1xf32, #tpu.memory_space<vmem>>, vector<1x1xf32>
      %45 = tpu.reciprocal %44 {approx = true} : vector<1x1xf32> -> vector<1x1xf32>
      %c0_28 = arith.constant 0 : index
      %c0_29 = arith.constant 0 : index
      %46 = vector.load %arg8[%c0_28, %c0_29] : memref<1x128xf32, #tpu.memory_space<vmem>>, vector<1x128xf32>
      %47 = vector.broadcast %45 : vector<1x1xf32> to vector<1x128xf32>
      %48 = arith.mulf %46, %47 : vector<1x128xf32>
      %c0_30 = arith.constant 0 : index
      %c0_31 = arith.constant 0 : index
      %49 = vector.load %arg5[%c0_30, %c0_31] : memref<1x128xf32, #tpu.memory_space<vmem>>, vector<1x128xf32>
      tpu.vector_store %arg5[%c0_30, %c0_31], %48 {strides = array<i32>} : memref<1x128xf32, #tpu.memory_space<vmem>>, vector<1x128xf32>,
    } else {
    }
    return
  }
  func.func @transform_0(%arg0: i32) -> (i32, i32) {
    %c0_i32 = arith.constant 0 : i32
    %c0_i32_0 = arith.constant 0 : i32
    return %arg0, %c0_i32 : i32, i32
  }
  func.func @transform_1(%arg0: i32) -> (i32, i32) {
    %c0_i32 = arith.constant 0 : i32
    %c0_i32_0 = arith.constant 0 : i32
    %c0_i32_1 = arith.constant 0 : i32
    return %c0_i32, %c0_i32_0 : i32, i32
  }
  func.func @transform_2(%arg0: i32) -> (i32, i32) {
    %c0_i32 = arith.constant 0 : i32
    %c0_i32_0 = arith.constant 0 : i32
    %c0_i32_1 = arith.constant 0 : i32
    return %c0_i32, %c0_i32_0 : i32, i32
  }
  func.func @transform_3(%arg0: i32) -> (i32, i32) {
    %c0_i32 = arith.constant 0 : i32
    %c0_i32_0 = arith.constant 0 : i32
    %c0_i32_1 = arith.constant 0 : i32
    return %c0_i32, %c0_i32_0 : i32, i32
  }
  func.func @transform_4(%arg0: i32) -> (i32, i32) {
    %c0_i32 = arith.constant 0 : i32
    %c0_i32_0 = arith.constant 0 : i32
    %c0_i32_1 = arith.constant 0 : i32
    return %c0_i32, %c0_i32_0 : i32, i32
  }
}

</mosaic_0001>

<llo_original>
// kernel: tpu_custom_call.1
$region0: #{tpu_custom_call.1}
  #allocation0 [shape = 'u32[]', space=smem, size = 0x4, offset = 0x4, fixed_abs, tag = 'smem constant byte address 0x4 - core index']
  #allocation1 [shape = 'u32[144,128]{1,0:T(1,128)}', space=vmem, size = 0x12000, scoped, tag = 'internal scratch']
  #allocation2 [shape = 'f32[1,1]{1,0:T(1,128)}', space=vmem, size = 0x200, scoped, tag = 'scratch operand']
  #allocation3 [shape = 'f32[1,1]{1,0:T(1,128)}', space=vmem, size = 0x200, scoped, tag = 'scratch operand']
  #allocation4 [shape = 'f32[1,128]{1,0:T(1,128)}', space=vmem, size = 0x200, scoped, tag = 'scratch operand']
  %s0 = inlined_call_operand.hbm [shape: f32[8,128], index: 0, kind: input, shape index: {}]
  %s1 = inlined_call_operand.hbm [shape: bf16[128,128], index: 1, kind: input, shape index: {}]
  %s2 = inlined_call_operand.vmem [shape: f32[1,128], index: 2, kind: input, shape index: {}]
  %s3 = inlined_call_operand.vmem [shape: f32[1,128], index: 3, kind: input, shape index: {}]
  %s4 = inlined_call_operand.hbm [shape: f32[1,128], index: 4, kind: output, shape index: {}]
  %s5 = sld [smem:[#allocation0]]
  $region42: #{tpu_custom_call.1} parent=0
    _
  %s7 = ssub.s32 1, %s5
  %s8 = scalar_select 0, %s7, %s5
  $region1: #{tpu_custom_call.1} parent=0
    #allocation5 [shape = 'u8[4096]{0}', space=vmem, size = 0x1000, scoped, tag = 'input window, operand 0, single buffered']
    #allocation6 [shape = 's32[1]{0}', space=sflag, size = 0x4, scoped, tag = 'scoped memory for tpu_custom_call.1']
    #allocation7 [shape = 's32[1]{0}', space=sflag, size = 0x4, scoped, tag = 'scoped memory for tpu_custom_call.1']
    #allocation8 [shape = 'u8[32768]{0}', space=vmem, size = 0x8000, scoped, tag = 'input window, operand 1, single buffered']
    #allocation9 [shape = 's32[1]{0}', space=sflag, size = 0x4, scoped, tag = 'scoped memory for tpu_custom_call.1']
    #allocation10 [shape = 'u8[512]{0}', space=vmem, size = 0x400, scoped, tag = 'output window, operand 0, single buffered']
    %9 = vsyncpa [#allocation6], 0
    %10 = vsyncpa [#allocation9], 0
    %11 = vsyncpa [#allocation7], 0
    // Predicated region
    $region2: #{tpu_custom_call.1} parent=1 // pred_check
      _
    $region3: #{tpu_custom_call.1} parent=1 // pred_check_branch
      %13 = sbr.rel (0) target = $region5
    $region4: #{tpu_custom_call.1} parent=1 // pred_region
      %s15 = ssub.s32 128, 128
      %16 = vsyncadd [#allocation6], %s15
      %s18 = sshll.u32 [#allocation5], 4
      %s19 = int_to_ptr.vmem [resolvable:$true] %s18
      %21 = dma.hbm_to_vmem [thread:$0]  %s0, 128, %s19, [#allocation6]
    $region5: #{tpu_custom_call.1} parent=1 // pred_fallthru
      _
    // Predicated region
    $region6: #{tpu_custom_call.1} parent=1 // pred_check
      _
    $region7: #{tpu_custom_call.1} parent=1 // pred_check_branch
      %23 = sbr.rel (0) target = $region9
    $region8: #{tpu_custom_call.1} parent=1 // pred_region
      %s25 = ssub.s32 1024, 1024
      %26 = vsyncadd [#allocation9], %s25
      %s27 = sshll.u32 [#allocation8], 4
      %s28 = int_to_ptr.vmem [resolvable:$true] %s27
      %33 = dma.hbm_to_vmem [thread:$0]  %s1, 1024, %s28, [#allocation9], 64, 64, 4
    $region9: #{tpu_custom_call.1} parent=1 // pred_fallthru
      _
    // Predicated region
    $region10: #{tpu_custom_call.1} parent=1 // pred_check
      _
    $region11: #{tpu_custom_call.1} parent=1 // pred_check_branch
      %35 = sbr.rel (0) target = $region13
    $region12: #{tpu_custom_call.1} parent=1 // pred_region
      _
    $region13: #{tpu_custom_call.1} parent=1 // pred_fallthru
      _
    // Predicated region
    $region14: #{tpu_custom_call.1} parent=1 // pred_check
      _
    $region15: #{tpu_custom_call.1} parent=1 // pred_check_branch
      %37 = sbr.rel (0) target = $region17
    $region16: #{tpu_custom_call.1} parent=1 // pred_region
      _
    $region17: #{tpu_custom_call.1} parent=1 // pred_fallthru
      _
    // Predicated region
    $region18: #{tpu_custom_call.1} parent=1 // pred_check
      _
    $region19: #{tpu_custom_call.1} parent=1 // pred_check_branch
      %39 = sbr.rel (0) target = $region21
    $region20: #{tpu_custom_call.1} parent=1 // pred_region
      %40 = dma.done [#allocation6], 128
    $region21: #{tpu_custom_call.1} parent=1 // pred_fallthru
      _
    // Predicated region
    $region22: #{tpu_custom_call.1} parent=1 // pred_check
      _
    $region23: #{tpu_custom_call.1} parent=1 // pred_check_branch
      %42 = sbr.rel (0) target = $region25
    $region24: #{tpu_custom_call.1} parent=1 // pred_region
      %43 = dma.done [#allocation9], 1024
    $region25: #{tpu_custom_call.1} parent=1 // pred_fallthru
      _
    %p45 = scmp.eq.s32.totalorder 0, 0
    // Predicated region
    $region26: #{tpu_custom_call.1} parent=1 // pred_check
      %p46 = pneg %p45
    $region27: #{tpu_custom_call.1} parent=1 // pred_check_branch
      %48 = sbr.rel (%p46) target = $region29
    $region28: #{tpu_custom_call.1} parent=1 // pred_region
      %vm49 = vcmask 0
      %50 = vst.msk [vmem:[#allocation2] sm:$0x1] %vm49, -1e+30
      %51 = vst.msk [vmem:[#allocation3] sm:$0x1] %vm49, 0.0
      %52 = vst [vmem:[#allocation4] sm:$0x1] 0.0
    $region29: #{tpu_custom_call.1} parent=1 // pred_fallthru
      _
    %v53 = vld [vmem:[#allocation5] sm:$0xff]
    %v54 = vpack.c.bf16 %v53, %v53
    %v55 = vld [vmem:[#allocation8] sm:$0xf]
    %v56 = vld [vmem:[#allocation8 + $0x4] sm:$0xf]
    %v57 = vld [vmem:[#allocation8 + $0x8] sm:$0xf]
    %v58 = vld [vmem:[#allocation8 + $0xc] sm:$0xf]
    %v59 = vld [vmem:[#allocation8 + $0x10] sm:$0xf]
    %v60 = vld [vmem:[#allocation8 + $0x14] sm:$0xf]
    %v61 = vld [vmem:[#allocation8 + $0x18] sm:$0xf]
    %v62 = vld [vmem:[#allocation8 + $0x1c] sm:$0xf]
    %v63 = vld [vmem:[#allocation8 + $0x20] sm:$0xf]
    %v64 = vld [vmem:[#allocation8 + $0x24] sm:$0xf]
    %v65 = vld [vmem:[#allocation8 + $0x28] sm:$0xf]
    %v66 = vld [vmem:[#allocation8 + $0x2c] sm:$0xf]
    %v67 = vld [vmem:[#allocation8 + $0x30] sm:$0xf]
    %v68 = vld [vmem:[#allocation8 + $0x34] sm:$0xf]
    %v69 = vld [vmem:[#allocation8 + $0x38] sm:$0xf]
    %v70 = vld [vmem:[#allocation8 + $0x3c] sm:$0xf]
    %v71 = vld [vmem:[%s2] sm:$0x1]
    %v73 = vlaneseq
    %v74 = vshrl.u32 %v73, 7
    %v75 = vsub.s32 0, %v74
    %v76 = vrot.slane %v71, %v75
    %v94 = vunpack.c.l.b16 %v55
    %v95 = vunpack.c.l.b16 %v56
    %v96 = vunpack.c.l.b16 %v57
    %v97 = vunpack.c.l.b16 %v58
    %v98 = vunpack.c.l.b16 %v59
    %v99 = vunpack.c.l.b16 %v60
    %v100 = vunpack.c.l.b16 %v61
    %v101 = vunpack.c.l.b16 %v62
    %v102 = vunpack.c.l.b16 %v63
    %v103 = vunpack.c.l.b16 %v64
    %v104 = vunpack.c.l.b16 %v65
    %v105 = vunpack.c.l.b16 %v66
    %v106 = vunpack.c.l.b16 %v67
    %v107 = vunpack.c.l.b16 %v68
    %v108 = vunpack.c.l.b16 %v69
    %v109 = vunpack.c.l.b16 %v70
    %v110 = vpack.c.b16 %v95, %v94
    %v111 = vpack.c.b16 %v97, %v96
    %v112 = vpack.c.b16 %v99, %v98
    %v113 = vpack.c.b16 %v101, %v100
    %v114 = vpack.c.b16 %v103, %v102
    %v115 = vpack.c.b16 %v105, %v104
    %v116 = vpack.c.b16 %v107, %v106
    %v117 = vpack.c.b16 %v109, %v108
    %126 = vmatprep.subr.bf16.mxu0 0
    %127 = vmatpush1.bf16.msra.mxu0 %v117
    %128 = vmatprep.subr.bf16.mxu0 0
    %129 = vmatpush1.bf16.msra.mxu0 %v116
    %130 = vmatprep.subr.bf16.mxu0 0
    %131 = vmatpush1.bf16.msra.mxu0 %v115
    %132 = vmatprep.subr.bf16.mxu0 0
    %133 = vmatpush1.bf16.msra.mxu0 %v114
    %134 = vmatprep.subr.bf16.mxu0 0
    %135 = vmatpush1.bf16.msra.mxu0 %v113
    %136 = vmatprep.subr.bf16.mxu0 0
    %137 = vmatpush1.bf16.msra.mxu0 %v112
    %138 = vmatprep.subr.bf16.mxu0 0
    %139 = vmatpush1.bf16.msra.mxu0 %v111
    %140 = vmatprep.subr.bf16.mxu0 0
    %141 = vmatpush1.bf16.msra.mxu0 %v110
    %142 = vmatprep.subr.bf16.mxu0 0
    %143 = vmatpush2.bf16.msra.mxu0 0
    %144 = vmatprep.subr.bf16.mxu0 0
    %145 = vmatpush2.bf16.msra.mxu0 0
    %146 = vmatprep.subr.bf16.mxu0 0
    %147 = vmatpush2.bf16.msra.mxu0 0
    %148 = vmatprep.subr.bf16.mxu0 0
    %149 = vmatpush2.bf16.msra.mxu0 0
    %150 = vmatprep.subr.bf16.mxu0 0
    %151 = vmatpush2.bf16.msra.mxu0 0
    %152 = vmatprep.subr.bf16.mxu0 0
    %153 = vmatpush2.bf16.msra.mxu0 0
    %154 = vmatprep.subr.bf16.mxu0 0
    %155 = vmatpush2.bf16.msra.mxu0 0
    %156 = vmatprep.subr.bf16.mxu0 0
    %157 = vmatpush2.bf16.msra.mxu0 0
    %158 = vmatprep.mubr.bf16.mxu0 0
    %159 = vmatmul.mubr.bf16.gmra.mxu0 %v54
    %v160 = vpop.f32.mrf.mxu0
    %v161 = vadd.f32 %v76, %v160
    %v162 = vpop.f32.mrf.mxu0
    %v163 = vpop.f32.mrf.mxu0
    %v164 = vpop.f32.mrf.mxu0
    %165 = vdwg.mxu0
    %v166 = vtanh.pop %v161
    %v167 = vld [vmem:[%s3] sm:$0x1]
    %v169 = vlaneseq
    %v170 = vshrl.u32 %v169, 7
    %v171 = vsub.s32 0, %v170
    %v172 = vrot.slane %v167, %v171
    %v174 = vmul.f32 %v166, %v172
    %175 = vadd.xlane.f32.xlu0 %v174
    %v176 = vpop.xlane.xlu0 %175
    %v177 = vld [vmem:[#allocation2] sm:$0x1]
    %v178 = vrot.slane %v176, 4
    %v179 = vmax.f32 %v176, %v178
    %v180 = vrot.slane %v179, 2
    %v181 = vmax.f32 %v179, %v180
    %v182 = vrot.slane %v181, 1
    %v183 = vmax.f32 %v181, %v182
    %v184 = vmax.f32 %v177, %v183
    %v185 = vsub.f32 %v177, %v184
    %v186 = vmul.f32 %v185, 1.442695
    %v187 = vpow.pop %v186
    %v189 = vlaneseq
    %v190 = vshrl.u32 %v189, 7
    %v191 = vsub.s32 0, %v190
    %v192 = vrot.slane %v184, %v191
    %v194 = vsub.f32 %v176, %v192
    %v195 = vmul.f32 %v194, 1.442695
    %v196 = vpow.pop %v195
    %v197 = vld [vmem:[#allocation3] sm:$0x1]
    %v198 = vmul.f32 %v187, %v197
    %vm199 = vcmask 7168
    %v200 = vsel %vm199, %v196, 0.0
    %v201 = vrot.slane %v200, 4
    %v202 = vadd.f32 %v200, %v201
    %v203 = vrot.slane %v202, 2
    %v204 = vadd.f32 %v202, %v203
    %v205 = vrot.slane %v204, 1
    %v206 = vadd.f32 %v204, %v205
    %v207 = vadd.f32 %v198, %v206
    %vm208 = vcmask 0
    %209 = vst.msk [vmem:[#allocation3] sm:$0x1] %vm208, %v207
    %v210 = vld [vmem:[#allocation4] sm:$0x1]
    %212 = vset.pattern.permute.xlu0 0
    %213 = vperm.xlu0 %212, %v187
    %v214 = vpop.permute.xlu0 %213
    %v216 = vlaneseq
    %v217 = vshrl.u32 %v216, 7
    %v218 = vsub.s32 0, %v217
    %v219 = vrot.slane %v214, %v218
    %v220 = vmul.f32 %v219, %v210
    %222 = vset.pattern.permute.xlu0 0
    %223 = vperm.xlu0 %222, %v196
    %v224 = vpop.permute.xlu0 %223
    %v226 = vmul.f32 %v224, %v53
    %v227 = vrot.slane %v226, 4
    %v228 = vadd.f32 %v226, %v227
    %v229 = vrot.slane %v228, 2
    %v230 = vadd.f32 %v228, %v229
    %v231 = vrot.slane %v230, 1
    %v232 = vadd.f32 %v230, %v231
    %v233 = vadd.f32 %v220, %v232
    %234 = vst [vmem:[#allocation4] sm:$0x1] %v233
    %235 = vst.msk [vmem:[#allocation2] sm:$0x1] %vm208, %v184
    // Predicated region
    $region30: #{tpu_custom_call.1} parent=1 // pred_check
      %p236 = pneg %p45
    $region31: #{tpu_custom_call.1} parent=1 // pred_check_branch
      %238 = sbr.rel (%p236) target = $region33
    $region32: #{tpu_custom_call.1} parent=1 // pred_region
      %v239 = vld [vmem:[#allocation3] sm:$0x1]
      %v240 = vrcp.pop %v239
      %v241 = vld [vmem:[#allocation4] sm:$0x1]
      %243 = vset.pattern.permute.xlu0 0
      %244 = vperm.xlu0 %243, %v240
      %v245 = vpop.permute.xlu0 %244
      %v247 = vlaneseq
      %v248 = vshrl.u32 %v247, 7
      %v249 = vsub.s32 0, %v248
      %v250 = vrot.slane %v245, %v249
      %v251 = vmul.f32 %v241, %v250
      %252 = vst [vmem:[#allocation10] sm:$0x1] %v251
    $region33: #{tpu_custom_call.1} parent=1 // pred_fallthru
      _
    // Predicated region
    $region34: #{tpu_custom_call.1} parent=1 // pred_check
      _
    $region35: #{tpu_custom_call.1} parent=1 // pred_check_branch
      %254 = sbr.rel (0) target = $region37
    $region36: #{tpu_custom_call.1} parent=1 // pred_region
      %s256 = ssub.s32 16, 16
      %257 = vsyncadd [#allocation7], %s256
      %s259 = sshll.u32 [#allocation10], 4
      %s260 = int_to_ptr.vmem [resolvable:$true] %s259
      %262 = dma.vmem_to_hbm [thread:$0]  %s260, 16, %s4, [#allocation7]
    $region37: #{tpu_custom_call.1} parent=1 // pred_fallthru
      _
    // Predicated region
    $region38: #{tpu_custom_call.1} parent=1 // pred_check
      _
    $region39: #{tpu_custom_call.1} parent=1 // pred_check_branch
      %264 = sbr.rel (0) target = $region41
    $region40: #{tpu_custom_call.1} parent=1 // pred_region
      %265 = dma.done [#allocation7], 16
    $region41: #{tpu_custom_call.1} parent=1 // pred_fallthru
      _
    %266 = vsyncpa [#allocation6], 1
    %267 = vsyncpa [#allocation9], 1
    %268 = vsyncpa [#allocation7], 1

</llo_original>
